<compile_context>
chip_gen: v6e
topology: v6e:2x2x1
jax: 0.10.0
libtpu: 0.0.40
codegen_flags: <defaults>
</compile_context>

<pallas_src>
import functools

import jax
import jax.numpy as jnp
from jax.experimental import pallas as pl
from jax.experimental.pallas import tpu as pltpu

_TILE_ELEMS = 1 << 20   # ~1M elements per streamed tile (4 MiB f32 / 2 MiB bf16)


def _mse_sum_kernel(x_ref, t_ref, out_ref, acc_ref, *,
                    tile_r, lane, rows_total, has_partial, acc_rows):
    i = pl.program_id(0)
    last = pl.num_programs(0) - 1

    @pl.when(i == 0)
    def _init():
        acc_ref[...] = jnp.zeros_like(acc_ref)

    def accumulate(mask_tail):
        # Difference in the native dtype (packed VALU for bf16); upcast only the diff.
        d = (x_ref[...] - t_ref[...]).astype(jnp.float32)
        if mask_tail:
            rows_left = rows_total - i * tile_r            # traced scalar
            row_id = jax.lax.broadcasted_iota(jnp.int32, (tile_r, lane), 0)
            d = jnp.where(row_id < rows_left, d, 0.0)      # ragged / OOB rows contribute 0
        d2 = d * d
        if acc_rows == 8:
            # Fold rows in groups of 8 sublanes -> pure VPU adds into the vector accumulator.
            acc_ref[...] += jnp.sum(d2.reshape(tile_r // 8, 8, lane), axis=0)
        else:
            acc_ref[...] += jnp.sum(d2, axis=0, keepdims=True)

    if has_partial:
        # Mask is only needed (and only paid for) on the final, partial tile.
        @pl.when(i != last)
        def _full():
            accumulate(False)

        @pl.when(i == last)
        def _ragged():
            accumulate(True)
    else:
        accumulate(False)

    @pl.when(i == last)
    def _finalize():
        # Single cross-lane/sublane reduce; lane-dense unmasked (8, 128) store.
        out_ref[...] = jnp.zeros_like(out_ref) + jnp.sum(acc_ref[...])


@jax.jit
def vae_loss(recon, target, z_mu, z_sigma):
    """recon/target: same shape (f32 or bf16); z_mu/z_sigma: (N, Z), z_sigma = log-variance.
    Returns f32 scalar: (sum((recon-target)^2) + KLD) / 1000, matching the PyTorch module."""
    assert recon.shape == target.shape
    total = int(recon.size)

    x_flat = recon.reshape(-1)
    t_flat = target.reshape(-1)

    if total % 128 != 0:
        # TODO(synk): rare ragged fallback (element count not a multiple of 128) materializes
        # a padded HBM copy; the common image-VAE path (C*H*W multiple of 128) never hits this.
        pad = 128 - total % 128
        x_flat = jnp.pad(x_flat, (0, pad))
        t_flat = jnp.pad(t_flat, (0, pad))   # both zero-padded -> diff == 0 in the tail

    padded_total = int(x_flat.size)
    lane = next(l for l in (512, 256, 128) if padded_total % l == 0)
    rows_total = padded_total // lane

    # ~1M-element tiles; 2048/4096/8192 rows are multiples of 32 (bf16/int8 sublane packing).
    tile_r_target = max(8, _TILE_ELEMS // lane)
    if rows_total >= tile_r_target:
        tile_r = tile_r_target
    else:
        tile_r = rows_total                              # single full-extent tile
    ntiles = pl.cdiv(rows_total, tile_r)
    has_partial = (rows_total % tile_r) != 0
    acc_rows = 8 if (tile_r % 8 == 0) else 1

    x2d = x_flat.reshape(rows_total, lane)               # zero-copy reshape, native dtype
    t2d = t_flat.reshape(rows_total, lane)
    itemsize = x2d.dtype.itemsize

    kernel = functools.partial(
        _mse_sum_kernel, tile_r=tile_r, lane=lane, rows_total=rows_total,
        has_partial=has_partial, acc_rows=acc_rows)

    mse_block = pl.pallas_call(
        kernel,
        out_shape=jax.ShapeDtypeStruct((8, 128), jnp.float32),
        grid_spec=pltpu.PrefetchScalarGridSpec(
            num_scalar_prefetch=0,
            grid=(ntiles,),
            in_specs=[
                pl.BlockSpec((tile_r, lane), lambda i: (i, 0)),
                pl.BlockSpec((tile_r, lane), lambda i: (i, 0)),
            ],
            out_specs=pl.BlockSpec((8, 128), lambda i: (0, 0)),
            scratch_shapes=[pltpu.VMEM((acc_rows, lane), jnp.float32)],
        ),
        compiler_params=pltpu.CompilerParams(
            dimension_semantics=("arbitrary",),          # streaming reduction axis
            vmem_limit_bytes=32 * 1024 * 1024,           # needed on v5e (16 MiB default)
        ),
        cost_estimate=pl.CostEstimate(
            flops=3 * padded_total,
            transcendentals=0,
            bytes_accessed=2 * padded_total * itemsize + 8 * 128 * 4,
        ),
    )(x2d, t2d)

    loss_mse = mse_block[0, 0]

    # KLD is O(N*Z) -- tiny; plain jnp keeps two DMAs + an exp/reduce out of the kernel.
    mu = z_mu.astype(jnp.float32)
    sig = z_sigma.astype(jnp.float32)
    loss_kld = -0.5 * jnp.sum(1.0 + sig - mu * mu - jnp.exp(sig))

    return (loss_mse + loss_kld) / 1000.0


if __name__ == "__main__":
    key = jax.random.PRNGKey(0)
    k1, k2, k3, k4 = jax.random.split(key, 4)

    N, C, H, W = 2, 4, 16, 16   # small reconstruction shapes
    Z = 32                      # latent dim

    recon = jax.random.normal(k1, (N, C, H, W), dtype=jnp.float32)
    target = jax.random.normal(k2, (N, C, H, W), dtype=jnp.float32)
    z_mu = jax.random.normal(k3, (N, Z), dtype=jnp.float32)
    z_sigma = jax.random.normal(k4, (N, Z), dtype=jnp.float32)

    loss = jax.block_until_ready(vae_loss(recon, target, z_mu, z_sigma))

    # Pure-JAX reference check
    ref_mse = jnp.sum((recon - target) ** 2)
    ref_kld = -0.5 * jnp.sum(1.0 + z_sigma - z_mu**2 - jnp.exp(z_sigma))
    ref = (ref_mse + ref_kld) / 1000.0
    assert jnp.allclose(loss, ref, rtol=1e-5, atol=1e-5), (loss, ref)

    print("KERNEL_OK")
</pallas_src>

<mosaic_0001>
module attributes {stable_mosaic.version = 11 : i64} {
  func.func @_mse_sum_kernel(%arg0: i32, %arg1: memref<4x512xf32, #tpu.memory_space<vmem>>, %arg2: memref<4x512xf32, #tpu.memory_space<vmem>>, %arg3: memref<8x128xf32, #tpu.memory_space<vmem>>, %arg4: memref<1x512xf32, #tpu.memory_space<vmem>>) attributes {dimension_semantics = [#tpu.dimension_semantics<arbitrary>], iteration_bounds = array<i64: 1>, scalar_prefetch = 0 : i64, scratch_operands = 1 : i64, tpu.core_type = #tpu.core_type<tc>, window_params = [{transform_indices = @transform_0, window_bounds = array<i64: 4, 512>}, {transform_indices = @transform_1, window_bounds = array<i64: 4, 512>}, {pipeline_mode = #tpu.pipeline_mode<synchronous>, transform_indices = @transform_2, window_bounds = array<i64: 8, 128>}]} {
    %c0_i32 = arith.constant 0 : i32
    %0 = arith.cmpi eq, %arg0, %c0_i32 : i32
    %1 = arith.extui %0 : i1 to i32
    %c0_i32_0 = arith.constant 0 : i32
    %2 = arith.cmpi ne, %1, %c0_i32_0 : i32
    scf.if %2 {
      %cst_10 = arith.constant 0.000000e+00 : f32
      %15 = vector.broadcast %cst_10 : f32 to vector<1x512xf32>
      %c0_11 = arith.constant 0 : index
      %c0_12 = arith.constant 0 : index
      %16 = vector.load %arg4[%c0_11, %c0_12] : memref<1x512xf32, #tpu.memory_space<vmem>>, vector<1x512xf32>
      tpu.vector_store %arg4[%c0_11, %c0_12], %15 {strides = array<i32>} : memref<1x512xf32, #tpu.memory_space<vmem>>, vector<1x512xf32>,
    } else {
    }
    %c0 = arith.constant 0 : index
    %c0_1 = arith.constant 0 : index
    %3 = vector.load %arg1[%c0, %c0_1] : memref<4x512xf32, #tpu.memory_space<vmem>>, vector<4x512xf32>
    %c0_2 = arith.constant 0 : index
    %c0_3 = arith.constant 0 : index
    %4 = vector.load %arg2[%c0_2, %c0_3] : memref<4x512xf32, #tpu.memory_space<vmem>>, vector<4x512xf32>
    %5 = arith.subf %3, %4 : vector<4x512xf32>
    %6 = arith.mulf %5, %5 : vector<4x512xf32>
    %c0_4 = arith.constant 0 : index
    %c0_5 = arith.constant 0 : index
    %7 = vector.load %arg4[%c0_4, %c0_5] : memref<1x512xf32, #tpu.memory_space<vmem>>, vector<1x512xf32>
    %cst = arith.constant dense<0.000000e+00> : vector<512xf32>
    %8 = vector.multi_reduction <add>, %6, %cst [0] : vector<4x512xf32> to vector<512xf32>
    %9 = vector.shape_cast %8 : vector<512xf32> to vector<1x512xf32>
    %10 = arith.addf %7, %9 : vector<1x512xf32>
    %c0_6 = arith.constant 0 : index
    %c0_7 = arith.constant 0 : index
    %11 = vector.load %arg4[%c0_6, %c0_7] : memref<1x512xf32, #tpu.memory_space<vmem>>, vector<1x512xf32>
    tpu.vector_store %arg4[%c0_6, %c0_7], %10 {strides = array<i32>} : memref<1x512xf32, #tpu.memory_space<vmem>>, vector<1x512xf32>,
    %c0_i32_8 = arith.constant 0 : i32
    %12 = arith.cmpi eq, %arg0, %c0_i32_8 : i32
    %13 = arith.extui %12 : i1 to i32
    %c0_i32_9 = arith.constant 0 : i32
    %14 = arith.cmpi ne, %13, %c0_i32_9 : i32
    scf.if %14 {
      %cst_10 = arith.constant 0.000000e+00 : f32
      %15 = vector.broadcast %cst_10 : f32 to vector<8x128xf32>
      %c0_11 = arith.constant 0 : index
      %c0_12 = arith.constant 0 : index
      %16 = vector.load %arg4[%c0_11, %c0_12] : memref<1x512xf32, #tpu.memory_space<vmem>>, vector<1x512xf32>
      %17 = vector.shape_cast %16 : vector<1x512xf32> to vector<1x1x512xf32>
      %cst_13 = arith.constant dense<0.000000e+00> : vector<1xf32>
      %18 = vector.multi_reduction <add>, %17, %cst_13 [1, 2] : vector<1x1x512xf32> to vector<1xf32>
      %19 = vector.shape_cast %18 : vector<1xf32> to vector<1x1x1xf32>
      %20 = vector.extract %19[0, 0, 0] : f32 from vector<1x1x1xf32>
      %21 = vector.broadcast %20 : f32 to vector<8x128xf32>
      %22 = arith.addf %15, %21 : vector<8x128xf32>
      %c0_14 = arith.constant 0 : index
      %c0_15 = arith.constant 0 : index
      %23 = vector.load %arg3[%c0_14, %c0_15] : memref<8x128xf32, #tpu.memory_space<vmem>>, vector<8x128xf32>
      tpu.vector_store %arg3[%c0_14, %c0_15], %22 {strides = array<i32>} : memref<8x128xf32, #tpu.memory_space<vmem>>, vector<8x128xf32>,
    } else {
    }
    return
  }
  func.func @transform_0(%arg0: i32) -> (i32, i32) {
    %c0_i32 = arith.constant 0 : i32
    %c0_i32_0 = arith.constant 0 : i32
    return %arg0, %c0_i32 : i32, i32
  }
  func.func @transform_1(%arg0: i32) -> (i32, i32) {
    %c0_i32 = arith.constant 0 : i32
    %c0_i32_0 = arith.constant 0 : i32
    return %arg0, %c0_i32 : i32, i32
  }
  func.func @transform_2(%arg0: i32) -> (i32, i32) {
    %c0_i32 = arith.constant 0 : i32
    %c0_i32_0 = arith.constant 0 : i32
    %c0_i32_1 = arith.constant 0 : i32
    return %c0_i32, %c0_i32_0 : i32, i32
  }
}

</mosaic_0001>

<llo_original>
// kernel: vae_loss.1
$region0: #{vae_loss.1}
  #allocation0 [shape = 'u32[]', space=smem, size = 0x4, offset = 0x4, fixed_abs, tag = 'smem constant byte address 0x4 - core index']
  #allocation1 [shape = 'u32[144,128]{1,0:T(1,128)}', space=vmem, size = 0x12000, scoped, tag = 'internal scratch']
  #allocation2 [shape = 'f32[1,512]{1,0:T(1,128)}', space=vmem, size = 0x800, scoped, tag = 'scratch operand']
  %s0 = inlined_call_operand.vmem [shape: f32[4,512], index: 0, kind: input, shape index: {}]
  %s1 = inlined_call_operand.vmem [shape: f32[4,512], index: 1, kind: input, shape index: {}]
  %s2 = inlined_call_operand.vmem [shape: f32[8,128], index: 2, kind: output, shape index: {}]
  %s3 = sld [smem:[#allocation0]]
  $region26: #{vae_loss.1} parent=0
    _
  %s5 = ssub.s32 1, %s3
  %s6 = scalar_select 0, %s5, %s3
  // Predicated region
  $region2: #{vae_loss.1} parent=0 // pred_check
    _
  $region3: #{vae_loss.1} parent=0 // pred_check_branch
    %8 = sbr.rel (0) target = $region5
  $region4: #{vae_loss.1} parent=0 // pred_region
    _
  $region5: #{vae_loss.1} parent=0 // pred_fallthru
    _
  // Predicated region
  $region6: #{vae_loss.1} parent=0 // pred_check
    _
  $region7: #{vae_loss.1} parent=0 // pred_check_branch
    %10 = sbr.rel (0) target = $region9
  $region8: #{vae_loss.1} parent=0 // pred_region
    _
  $region9: #{vae_loss.1} parent=0 // pred_fallthru
    _
  %p11 = scmp.eq.s32.totalorder 0, 0
  // Predicated region
  $region10: #{vae_loss.1} parent=0 // pred_check
    %p12 = pneg %p11
  $region11: #{vae_loss.1} parent=0 // pred_check_branch
    %14 = sbr.rel (%p12) target = $region13
  $region12: #{vae_loss.1} parent=0 // pred_region
    %v15 = vlaneseq
    %vm16 = vcmp.ge.s32.totalorder %v15, 0
    %vm17 = vcmp.lt.s32.totalorder %v15, 512
    %vm18 = vmand %vm16, %vm17
    %19 = vst.msk [vmem:[#allocation2] sm:$0xf] %vm18, 0.0
  $region13: #{vae_loss.1} parent=0 // pred_fallthru
    _
  %v20 = vld [vmem:[%s0] sm:$0xff]
  %v21 = vld [vmem:[%s0 + $0x8] sm:$0xff]
  %v22 = vld [vmem:[%s1] sm:$0xff]
  %v23 = vld [vmem:[%s1 + $0x8] sm:$0xff]
  %v24 = vsub.f32 %v20, %v22
  %v25 = vsub.f32 %v21, %v23
  %v26 = vmul.f32 %v24, %v24
  %v27 = vmul.f32 %v25, %v25
  %v28 = vld [vmem:[#allocation2] sm:$0xf]
  %v31 = vcombine.high %v26, %v26
  %v32 = vcombine.high %v27, %v27
  %vm35 = vcmask 1043456
  %v36 = vsel %vm35, %v26, 0.0
  %v37 = vrot.slane %v36, 4
  %v38 = vadd.f32 %v36, %v37
  %v39 = vrot.slane %v38, 2
  %v40 = vadd.f32 %v38, %v39
  %v41 = vrot.slane %v40, 1
  %v42 = vadd.f32 %v40, %v41
  %v43 = vsel %vm35, %v31, 0.0
  %v44 = vrot.slane %v43, 4
  %v45 = vadd.f32 %v43, %v44
  %v46 = vrot.slane %v45, 2
  %v47 = vadd.f32 %v45, %v46
  %v48 = vrot.slane %v47, 1
  %v49 = vadd.f32 %v47, %v48
  %v50 = vsel %vm35, %v27, 0.0
  %v51 = vrot.slane %v50, 4
  %v52 = vadd.f32 %v50, %v51
  %v53 = vrot.slane %v52, 2
  %v54 = vadd.f32 %v52, %v53
  %v55 = vrot.slane %v54, 1
  %v56 = vadd.f32 %v54, %v55
  %v57 = vsel %vm35, %v32, 0.0
  %v58 = vrot.slane %v57, 4
  %v59 = vadd.f32 %v57, %v58
  %v60 = vrot.slane %v59, 2
  %v61 = vadd.f32 %v59, %v60
  %v62 = vrot.slane %v61, 1
  %v63 = vadd.f32 %v61, %v62
  %v68 = vcombine.low %v42, %v49
  %v69 = vcombine.low %v56, %v63
  %v71 = vunpack.c.l.s4 1966171168
  %v72 = vunpack.c.0.s8 %v71
  %v73 = vlaneseq
  %v74 = vshrl.u32 %v73, 7
  %v75 = vsub.s32 %v72, %v74
  %v76 = vrot.slane %v68, %v75
  %v78 = vunpack.c.l.s4 1966171168
  %v79 = vunpack.c.0.s8 %v78
  %v80 = vlaneseq
  %v81 = vshrl.u32 %v80, 7
  %v82 = vsub.s32 %v79, %v81
  %v83 = vrot.slane %v69, %v82
  %v84 = vcombine.low %v76, %v83
  %v86 = vunpack.c.l.s4 1966171168
  %v87 = vunpack.c.0.s8 %v86
  %v88 = vlaneseq
  %v89 = vshrl.u32 %v88, 7
  %v90 = vsub.s32 %v87, %v89
  %v91 = vrot.slane %v84, %v90
  %v93 = vadd.f32 %v28, %v91
  %v94 = vlaneseq
  %vm95 = vcmp.ge.s32.totalorder %v94, 0
  %vm96 = vcmp.lt.s32.totalorder %v94, 512
  %vm97 = vmand %vm95, %vm96
  %98 = vst.msk [vmem:[#allocation2] sm:$0xf] %vm97, %v93
  // Predicated region
  $region14: #{vae_loss.1} parent=0 // pred_check
    %p99 = pneg %p11
  $region15: #{vae_loss.1} parent=0 // pred_check_branch
    %101 = sbr.rel (%p99) target = $region17
  $region16: #{vae_loss.1} parent=0 // pred_region
    %v102 = vld [vmem:[#allocation2] sm:$0xf]
    %v104 = vlaneseq
    %v105 = vshrl.u32 %v104, 7
    %v106 = vsub.s32 0, %v105
    %v107 = vrot.slane %v102, %v106
    %v108 = vlaneseq
    %v109 = vshrl.u32 %v108, 7
    %v110 = vsub.s32 1, %v109
    %v111 = vrot.slane %v102, %v110
    %v112 = vlaneseq
    %v113 = vshrl.u32 %v112, 7
    %v114 = vsub.s32 2, %v113
    %v115 = vrot.slane %v102, %v114
    %v116 = vlaneseq
    %v117 = vshrl.u32 %v116, 7
    %v118 = vsub.s32 3, %v117
    %v119 = vrot.slane %v102, %v118
    %vm124 = vcmask 1040384
    %v125 = vsel %vm124, %v107, 0.0
    %v126 = vsel %vm124, %v111, 0.0
    %v127 = vadd.f32 %v125, %v126
    %v128 = vsel %vm124, %v115, 0.0
    %v129 = vadd.f32 %v127, %v128
    %v130 = vsel %vm124, %v119, 0.0
    %v131 = vadd.f32 %v129, %v130
    %132 = vadd.xlane.f32.xlu0 %v131
    %v133 = vpop.xlane.xlu0 %132
    %v134 = vrot.slane %v133, 4
    %v135 = vadd.f32 %v133, %v134
    %v136 = vrot.slane %v135, 2
    %v137 = vadd.f32 %v135, %v136
    %v138 = vrot.slane %v137, 1
    %v139 = vadd.f32 %v137, %v138
    %s140 = vtos %v139
    %v141 = vstv %s140
    %v142 = vadd.f32 %v141, 0.0
    %143 = vst [vmem:[%s2] sm:$0xff] %v142
  $region17: #{vae_loss.1} parent=0 // pred_fallthru
    _
  // Predicated region
  $region18: #{vae_loss.1} parent=0 // pred_check
    _
  $region19: #{vae_loss.1} parent=0 // pred_check_branch
    %145 = sbr.rel (0) target = $region21
  $region20: #{vae_loss.1} parent=0 // pred_region
    _
  $region21: #{vae_loss.1} parent=0 // pred_fallthru
    _
  // Predicated region
  $region22: #{vae_loss.1} parent=0 // pred_check
    _
  $region23: #{vae_loss.1} parent=0 // pred_check_branch
    %147 = sbr.rel (0) target = $region25
  $region24: #{vae_loss.1} parent=0 // pred_region
    _
  $region25: #{vae_loss.1} parent=0 // pred_fallthru
    _

</llo_original>
